<compile_context>
chip_gen: v7x
topology: tpu7x:2x2x1
jax: 0.10.0
libtpu: 0.0.40
codegen_flags: <defaults>
</compile_context>

<pallas_src>
import functools

import jax
import jax.numpy as jnp
from jax.experimental import pallas as pl
from jax.experimental.pallas import tpu as pltpu

LANE = 128
SUBLANE = 8
CHUNK_ROWS = 256            # inner accumulation chunk: 256x128 f32 = 32 vregs live
ROW_TILE = 4096             # rows per grid step: 2 MiB f32 per input per buffer
FAST_PATH_MAX_ROWS = 4096   # single-block path: <= 2 MiB f32 per input
W_CAP = 65536               # max row width (elements) for the unaligned 2-D view
ROWS_TARGET_ELEMS = 262144  # ~1 MiB f32 per input tile on the unaligned path


# ---------------------------------------------------------------------------
# Aligned (numel % 128 == 0) path: lane-dense [rows, 128] view.
# ---------------------------------------------------------------------------

def _partial_sq_sum(p_ref, g_ref, *, base_row=None, rows=None):
    """Sum of squared differences over a (ROW_TILE, 128) block, folded into an
    (8, 128) f32 vector.  Chunked, unrolled fori_loop bounds live vregs.  If
    `base_row` is given, global rows >= `rows` are masked (partial / phantom
    tiles)."""
    def body(c, acc):
        off = pl.multiple_of(c * CHUNK_ROWS, CHUNK_ROWS)
        a = p_ref[pl.ds(off, CHUNK_ROWS), :].astype(jnp.float32)
        b = g_ref[pl.ds(off, CHUNK_ROWS), :].astype(jnp.float32)
        d = a - b
        sq = d * d
        if base_row is not None:
            rid = jax.lax.broadcasted_iota(jnp.int32, (CHUNK_ROWS, LANE), 0)
            sq = jnp.where(base_row + off + rid < rows, sq, 0.0)
        return acc + sq.reshape(CHUNK_ROWS // SUBLANE, SUBLANE, LANE).sum(axis=0)

    return jax.lax.fori_loop(0, ROW_TILE // CHUNK_ROWS, body,
                             jnp.zeros((SUBLANE, LANE), jnp.float32),
                             unroll=True)


def _mse_single_block_kernel(p_ref, g_ref, o_ref):
    # Whole slab in one block: one DMA, one reduce, no phases.
    d = p_ref[...].astype(jnp.float32) - g_ref[...].astype(jnp.float32)
    o_ref[0, 0] = jnp.sum(d * d)


def _mse_tiled_kernel(p_ref, g_ref, o_ref, acc_ref, *,
                      rows, tiles_per_slice, needs_mask):
    k = pl.program_id(1)  # reduction axis within this slice ("arbitrary")

    @pl.when(k == 0)
    def _():
        acc_ref[...] = jnp.zeros_like(acc_ref)

    if needs_mask:
        tile_idx = pl.program_id(0) * tiles_per_slice + k
        base_row = tile_idx * ROW_TILE
        # True only for the single genuinely-partial tile and for phantom
        # tiles created by an uneven 2-way slice split (masked to zero).
        is_partial = base_row + ROW_TILE > rows

        @pl.when(jnp.logical_not(is_partial))
        def _():
            acc_ref[...] += _partial_sq_sum(p_ref, g_ref)

        @pl.when(is_partial)
        def _():
            acc_ref[...] += _partial_sq_sum(p_ref, g_ref,
                                            base_row=base_row, rows=rows)
    else:
        acc_ref[...] += _partial_sq_sum(p_ref, g_ref)

    @pl.when(k == pl.num_programs(1) - 1)
    def _():
        # Single cross-lane/sublane (XLU) reduce, once per slice.
        o_ref[0, 0] = jnp.sum(acc_ref[...])


# ---------------------------------------------------------------------------
# Unaligned (numel % 128 != 0) path: free reshape to (M, W), W = suffix
# product of the original shape.  No jnp.pad copies of the inputs.
# ---------------------------------------------------------------------------

def _mse_rows_kernel(p_ref, g_ref, o_ref, *, m_rows, tile_rows, needs_mask):
    d = p_ref[...].astype(jnp.float32) - g_ref[...].astype(jnp.float32)
    sq = d * d
    if needs_mask:
        i = pl.program_id(0)
        is_partial = (i + 1) * tile_rows > m_rows

        @pl.when(jnp.logical_not(is_partial))
        def _():
            o_ref[0, 0] = jnp.sum(sq)

        @pl.when(is_partial)
        def _():
            rid = jax.lax.broadcasted_iota(jnp.int32, sq.shape, 0)
            o_ref[0, 0] = jnp.sum(jnp.where(i * tile_rows + rid < m_rows, sq, 0.0))
    else:
        o_ref[0, 0] = jnp.sum(sq)


def _suffix_width(shape):
    """Largest suffix product of `shape` that is <= W_CAP (None if even the
    last dim alone exceeds the cap)."""
    w = 1
    best = None
    for d in reversed(shape):
        w *= d
        if w <= W_CAP:
            best = w
        else:
            break
    return best


# ---------------------------------------------------------------------------
# Wrapper
# ---------------------------------------------------------------------------

def loss_rec_l2(pred_v, gt_v):
    """MSE(pred_v, gt_v) with mean reduction, computed in Pallas TPU kernels."""
    assert pred_v.shape == gt_v.shape, "MSELoss requires matching shapes"
    n_elements = pred_v.size
    itemsize = jnp.dtype(pred_v.dtype).itemsize
    cost = pl.CostEstimate(flops=3 * n_elements, transcendentals=0,
                           bytes_accessed=2 * n_elements * itemsize)

    p = pred_v.reshape(-1)   # contiguous flatten: free
    g = gt_v.reshape(-1)

    if n_elements % LANE == 0:
        rows = n_elements // LANE
        p2 = p.reshape(rows, LANE)   # zero-copy lane-dense view
        g2 = g.reshape(rows, LANE)

        if rows <= FAST_PATH_MAX_ROWS:
            # Small inputs: single block, no accumulator, no phases.
            partials = pl.pallas_call(
                _mse_single_block_kernel,
                out_shape=jax.ShapeDtypeStruct((1, 1), jnp.float32),
                grid_spec=pltpu.PrefetchScalarGridSpec(
                    num_scalar_prefetch=0,
                    grid=(1,),
                    in_specs=[pl.BlockSpec((rows, LANE), lambda i: (0, 0)),
                              pl.BlockSpec((rows, LANE), lambda i: (0, 0))],
                    out_specs=pl.BlockSpec((1, 1), lambda i: (0, 0),
                                           memory_space=pltpu.SMEM),
                ),
                compiler_params=pltpu.CompilerParams(
                    dimension_semantics=("arbitrary",),
                    vmem_limit_bytes=32 << 20),
                cost_estimate=cost,
            )(p2, g2)
        else:
            n_tiles = pl.cdiv(rows, ROW_TILE)
            # Always split 2 ways so both v7x TensorCores stream; an uneven
            # split re-reads one clamped tile whose contribution is masked.
            num_slices = 2
            tiles_per_slice = pl.cdiv(n_tiles, num_slices)
            needs_mask = (num_slices * tiles_per_slice * ROW_TILE) != rows
            last_tile = n_tiles - 1

            def tile_map(s, k):
                return (jnp.minimum(s * tiles_per_slice + k, last_tile), 0)

            kernel = functools.partial(
                _mse_tiled_kernel, rows=rows,
                tiles_per_slice=tiles_per_slice, needs_mask=needs_mask)

            partials = pl.pallas_call(
                kernel,
                out_shape=jax.ShapeDtypeStruct((num_slices, 1), jnp.float32),
                grid_spec=pltpu.PrefetchScalarGridSpec(
                    num_scalar_prefetch=0,
                    grid=(num_slices, tiles_per_slice),
                    in_specs=[pl.BlockSpec((ROW_TILE, LANE), tile_map),
                              pl.BlockSpec((ROW_TILE, LANE), tile_map)],
                    out_specs=pl.BlockSpec((1, 1), lambda s, k: (s, 0),
                                           memory_space=pltpu.SMEM),
                    scratch_shapes=[pltpu.VMEM((SUBLANE, LANE), jnp.float32)],
                ),
                compiler_params=pltpu.CompilerParams(
                    dimension_semantics=("parallel", "arbitrary")),
                cost_estimate=cost,
            )(p2, g2)
    else:
        width = _suffix_width(pred_v.shape)
        if width is None:
            # TODO(synk): pathological shape (last dim alone > W_CAP with an
            # unaligned numel) — fall back to a padded lane-dense view.
            pad = LANE - n_elements % LANE
            p2 = jnp.pad(p, (0, pad)).reshape(-1, LANE)
            g2 = jnp.pad(g, (0, pad)).reshape(-1, LANE)
            m_rows, width = p2.shape
        else:
            m_rows = n_elements // width
            p2 = p.reshape(m_rows, width)   # free reshape (suffix split)
            g2 = g.reshape(m_rows, width)

        width_padded = pl.cdiv(width, LANE) * LANE
        tile_rows = max(SUBLANE,
                        (ROWS_TARGET_ELEMS // width_padded) // SUBLANE * SUBLANE)
        if tile_rows >= m_rows:
            tile_rows = m_rows          # full dim: always a legal block
        n_row_tiles = pl.cdiv(m_rows, tile_rows)
        needs_mask = (m_rows % tile_rows) != 0

        kernel = functools.partial(_mse_rows_kernel, m_rows=m_rows,
                                   tile_rows=tile_rows, needs_mask=needs_mask)
        partials = pl.pallas_call(
            kernel,
            out_shape=jax.ShapeDtypeStruct((n_row_tiles, 1), jnp.float32),
            grid_spec=pltpu.PrefetchScalarGridSpec(
                num_scalar_prefetch=0,
                grid=(n_row_tiles,),
                in_specs=[pl.BlockSpec((tile_rows, width), lambda i: (i, 0)),
                          pl.BlockSpec((tile_rows, width), lambda i: (i, 0))],
                out_specs=pl.BlockSpec((1, 1), lambda i: (i, 0),
                                       memory_space=pltpu.SMEM),
            ),
            compiler_params=pltpu.CompilerParams(
                dimension_semantics=("parallel",),
                vmem_limit_bytes=32 << 20),
            cost_estimate=cost,
        )(p2, g2)

    return jnp.sum(partials) / jnp.float32(n_elements)


if __name__ == "__main__":
    key = jax.random.PRNGKey(0)
    k1, k2, k3, k4, k5, k6 = jax.random.split(key, 6)

    # 1) Small NCHW example (aligned -> single-block fast path).
    pred_a = jax.random.normal(k1, (2, 4, 16, 16), dtype=jnp.float32)
    gt_a = jax.random.normal(k2, (2, 4, 16, 16), dtype=jnp.float32)
    loss_a = loss_rec_l2(pred_a, gt_a)
    jax.block_until_ready(loss_a)
    ref_a = jnp.mean((pred_a - gt_a) ** 2)
    assert jnp.allclose(loss_a, ref_a, rtol=1e-5, atol=1e-6), (loss_a, ref_a)

    # 2) Oddly-shaped input (numel % 128 != 0 -> unaligned (M, W) path, no pad).
    pred_b = jax.random.normal(k3, (4, 8, 150, 141), dtype=jnp.float32)
    gt_b = jax.random.normal(k4, (4, 8, 150, 141), dtype=jnp.float32)
    loss_b = loss_rec_l2(pred_b, gt_b)
    jax.block_until_ready(loss_b)
    ref_b = jnp.mean((pred_b - gt_b) ** 2)
    assert jnp.allclose(loss_b, ref_b, rtol=1e-4, atol=1e-6), (loss_b, ref_b)

    # 3) Larger aligned input: tiled path with uneven 2-way slice split,
    #    a partial last tile and a masked phantom tile.
    pred_c = jax.random.normal(k5, (2, 4, 384, 384), dtype=jnp.float32)
    gt_c = jax.random.normal(k6, (2, 4, 384, 384), dtype=jnp.float32)
    loss_c = loss_rec_l2(pred_c, gt_c)
    jax.block_until_ready(loss_c)
    ref_c = jnp.mean((pred_c - gt_c) ** 2)
    assert jnp.allclose(loss_c, ref_c, rtol=1e-4, atol=1e-6), (loss_c, ref_c)

    print("KERNEL_OK")
</pallas_src>

<mosaic_0001>
module attributes {stable_mosaic.version = 11 : i64} {
  func.func @_mse_single_block_kernel(%arg0: i32, %arg1: memref<16x128xf32, #tpu.memory_space<vmem>>, %arg2: memref<16x128xf32, #tpu.memory_space<vmem>>, %arg3: memref<1x1xf32, #tpu.memory_space<smem>>) attributes {dimension_semantics = [#tpu.dimension_semantics<arbitrary>], iteration_bounds = array<i64: 1>, scalar_prefetch = 0 : i64, scratch_operands = 0 : i64, tpu.core_type = #tpu.core_type<tc>, window_params = [{pipeline_mode = #tpu.pipeline_mode<synchronous>, transform_indices = @transform_0, window_bounds = array<i64: 16, 128>}, {pipeline_mode = #tpu.pipeline_mode<synchronous>, transform_indices = @transform_1, window_bounds = array<i64: 16, 128>}, {transform_indices = @transform_2, window_bounds = array<i64: 1, 1>}]} {
    %c0 = arith.constant 0 : index
    %c0_0 = arith.constant 0 : index
    %0 = vector.load %arg1[%c0, %c0_0] : memref<16x128xf32, #tpu.memory_space<vmem>>, vector<16x128xf32>
    %c0_1 = arith.constant 0 : index
    %c0_2 = arith.constant 0 : index
    %1 = vector.load %arg2[%c0_1, %c0_2] : memref<16x128xf32, #tpu.memory_space<vmem>>, vector<16x128xf32>
    %2 = arith.subf %0, %1 : vector<16x128xf32>
    %3 = arith.mulf %2, %2 : vector<16x128xf32>
    %4 = vector.shape_cast %3 : vector<16x128xf32> to vector<1x16x128xf32>
    %cst = arith.constant dense<0.000000e+00> : vector<1xf32>
    %5 = vector.multi_reduction <add>, %4, %cst [1, 2] : vector<1x16x128xf32> to vector<1xf32>
    %6 = vector.shape_cast %5 : vector<1xf32> to vector<1x1x1xf32>
    %7 = vector.extract %6[0, 0, 0] : f32 from vector<1x1x1xf32>
    %c0_3 = arith.constant 0 : index
    %c0_4 = arith.constant 0 : index
    %8 = memref.load %arg3[%c0_3, %c0_4] : memref<1x1xf32, #tpu.memory_space<smem>>
    memref.store %7, %arg3[%c0_3, %c0_4] : memref<1x1xf32, #tpu.memory_space<smem>>
    return
  }
  func.func @transform_0(%arg0: i32) -> (i32, i32) {
    %c0_i32 = arith.constant 0 : i32
    %c0_i32_0 = arith.constant 0 : i32
    %c0_i32_1 = arith.constant 0 : i32
    return %c0_i32, %c0_i32_0 : i32, i32
  }
  func.func @transform_1(%arg0: i32) -> (i32, i32) {
    %c0_i32 = arith.constant 0 : i32
    %c0_i32_0 = arith.constant 0 : i32
    %c0_i32_1 = arith.constant 0 : i32
    return %c0_i32, %c0_i32_0 : i32, i32
  }
  func.func @transform_2(%arg0: i32) -> (i32, i32) {
    %c0_i32 = arith.constant 0 : i32
    %c0_i32_0 = arith.constant 0 : i32
    %c0_i32_1 = arith.constant 0 : i32
    return %c0_i32, %c0_i32_0 : i32, i32
  }
}

</mosaic_0001>

<llo_original>
// kernel: tpu_custom_call.1
$region0: #{tpu_custom_call.1}
  #allocation0 [shape = 'u32[]', space=smem, size = 0x4, offset = 0x4, fixed_abs, tag = 'smem constant byte address 0x4 - core index']
  #allocation1 [shape = 'u32[144,128]{1,0:T(1,128)}', space=vmem, size = 0x12000, scoped, tag = 'internal scratch']
  %s0 = inlined_call_operand.hbm [shape: f32[16,128], index: 0, kind: input, shape index: {}]
  %s1 = inlined_call_operand.hbm [shape: f32[16,128], index: 1, kind: input, shape index: {}]
  %s2 = inlined_call_operand.hbm [shape: f32[1,1], index: 2, kind: output, shape index: {}]
  %s3 = sld [smem:[#allocation0]]
  $region26: #{tpu_custom_call.1} parent=0
    _
  %s5 = ssub.s32 1, %s3
  %s6 = scalar_select 0, %s5, %s3
  $region1: #{tpu_custom_call.1} parent=0
    #allocation2 [shape = 'u8[8192]{0}', space=vmem, size = 0x2000, scoped, tag = 'input window, operand 0, single buffered']
    #allocation3 [shape = 's32[1]{0}', space=sflag, size = 0x4, scoped, tag = 'scoped memory for tpu_custom_call.1']
    #allocation4 [shape = 's32[1]{0}', space=sflag, size = 0x4, scoped, tag = 'scoped memory for tpu_custom_call.1']
    #allocation5 [shape = 'u8[8192]{0}', space=vmem, size = 0x2000, scoped, tag = 'input window, operand 1, single buffered']
    #allocation6 [shape = 's32[1]{0}', space=sflag, size = 0x4, scoped, tag = 'scoped memory for tpu_custom_call.1']
    #allocation7 [shape = 'u8[512]{0}', space=smem, size = 0x200, scoped, tag = 'output window, operand 0, single buffered']
    %7 = vsyncpa [#allocation3], 0
    %8 = vsyncpa [#allocation6], 0
    %9 = vsyncpa [#allocation4], 0
    // Predicated region
    $region2: #{tpu_custom_call.1} parent=1 // pred_check
      _
    $region3: #{tpu_custom_call.1} parent=1 // pred_check_branch
      %11 = sbr.rel (0) target = $region5
    $region4: #{tpu_custom_call.1} parent=1 // pred_region
      %s13 = ssub.s32 256, 256
      %14 = vsyncadd [#allocation3], %s13
      %s15 = sshll.u32 [#allocation2], 4
      %s16 = int_to_ptr.vmem [resolvable:$true] %s15
      %21 = dma.hbm_to_vmem [thread:$0]  %s0, 256, %s16, [#allocation3], 128, 128, 8
    $region5: #{tpu_custom_call.1} parent=1 // pred_fallthru
      _
    // Predicated region
    $region6: #{tpu_custom_call.1} parent=1 // pred_check
      _
    $region7: #{tpu_custom_call.1} parent=1 // pred_check_branch
      %23 = sbr.rel (0) target = $region9
    $region8: #{tpu_custom_call.1} parent=1 // pred_region
      %s25 = ssub.s32 256, 256
      %26 = vsyncadd [#allocation6], %s25
      %s27 = sshll.u32 [#allocation5], 4
      %s28 = int_to_ptr.vmem [resolvable:$true] %s27
      %33 = dma.hbm_to_vmem [thread:$0]  %s1, 256, %s28, [#allocation6], 128, 128, 8
    $region9: #{tpu_custom_call.1} parent=1 // pred_fallthru
      _
    // Predicated region
    $region10: #{tpu_custom_call.1} parent=1 // pred_check
      _
    $region11: #{tpu_custom_call.1} parent=1 // pred_check_branch
      %35 = sbr.rel (0) target = $region13
    $region12: #{tpu_custom_call.1} parent=1 // pred_region
      %36 = dma.done [#allocation3], 256
    $region13: #{tpu_custom_call.1} parent=1 // pred_fallthru
      _
    // Predicated region
    $region14: #{tpu_custom_call.1} parent=1 // pred_check
      _
    $region15: #{tpu_custom_call.1} parent=1 // pred_check_branch
      %38 = sbr.rel (0) target = $region17
    $region16: #{tpu_custom_call.1} parent=1 // pred_region
      %39 = dma.done [#allocation6], 256
    $region17: #{tpu_custom_call.1} parent=1 // pred_fallthru
      _
    %v40 = vld [vmem:[#allocation2] sm:$0xff]
    %v41 = vld [vmem:[#allocation2 + $0x8] sm:$0xff]
    %v42 = vld [vmem:[#allocation5] sm:$0xff]
    %v43 = vld [vmem:[#allocation5 + $0x8] sm:$0xff]
    %v44 = vsub.f32 %v40, %v42
    %v45 = vsub.f32 %v41, %v43
    %v46 = vmul.f32 %v44, %v44
    %v47 = vmul.f32 %v45, %v45
    %v48 = vadd.f32 %v46, %v47
    %49 = vadd.xlane.f32.xlu0 %v48
    %v50 = vpop.xlane.xlu0 %49
    %v51 = vrot.slane %v50, 4
    %v52 = vadd.f32 %v50, %v51
    %v53 = vrot.slane %v52, 2
    %v54 = vadd.f32 %v52, %v53
    %v55 = vrot.slane %v54, 1
    %v56 = vadd.f32 %v54, %v55
    %s57 = vtos %v56
    %s58 = scalar_lea.smem [#allocation7], 0
    %59 = sst [smem:[%s58]] %s57
    // Predicated region
    $region18: #{tpu_custom_call.1} parent=1 // pred_check
      _
    $region19: #{tpu_custom_call.1} parent=1 // pred_check_branch
      %61 = sbr.rel (0) target = $region21
    $region20: #{tpu_custom_call.1} parent=1 // pred_region
      %s63 = ssub.s32 16, 16
      %64 = vsyncadd [#allocation4], %s63
      %67 = dma.smem_to_hbm [#allocation7], 16, %s2, [#allocation4]
    $region21: #{tpu_custom_call.1} parent=1 // pred_fallthru
      _
    // Predicated region
    $region22: #{tpu_custom_call.1} parent=1 // pred_check
      _
    $region23: #{tpu_custom_call.1} parent=1 // pred_check_branch
      %69 = sbr.rel (0) target = $region25
    $region24: #{tpu_custom_call.1} parent=1 // pred_region
      %70 = dma.done [#allocation4], 16
    $region25: #{tpu_custom_call.1} parent=1 // pred_fallthru
      _
    %71 = sfence
    %72 = vsyncpa [#allocation3], 1
    %73 = vsyncpa [#allocation6], 1
    %74 = vsyncpa [#allocation4], 1

</llo_original>
